<compile_context>
chip_gen: v5e
topology: v5e:2x2
jax: 0.10.0
libtpu: 0.0.40
codegen_flags: <defaults>
</compile_context>

<pallas_src>
import functools

import jax
import jax.numpy as jnp
from jax.experimental import pallas as pl
from jax.experimental.pallas import tpu as pltpu

EPS = 1e-5
_LANE = 128
_SUBLANE = 8
_MAX_ROW_TILE = 8192          # rows per block (each row = 128 lanes)


def _round_up(a, b):
    return -(-a // b) * b


def _vmem_limit_bytes():
    # v5e/v6e: 128 MiB physical VMEM -> 64 MiB budget; v7x: 64 MiB -> 32 MiB budget.
    try:
        cap = pltpu.get_tpu_info().vmem_capacity_bytes
    except Exception:  # pragma: no cover - conservative fallback
        cap = 64 * 1024 * 1024
    return max(16 * 1024 * 1024, min(cap // 2, 96 * 1024 * 1024))


def _segment_norm_kernel(x_ref, seg_ref, o_ref, *, inv_l):
    # x_ref: (TR, 128). Each 128-lane row holds 128//L independent whole instances.
    # seg_ref: (128, 128) block-diagonal ones; x @ seg = per-segment sum broadcast
    # back to every lane of its segment (one MXU pass, no XLU reshuffles).
    x = x_ref[...].astype(jnp.float32)
    seg = seg_ref[...]
    mean = jnp.dot(x, seg, preferred_element_type=jnp.float32) * inv_l
    centered = x - mean
    var = jnp.dot(centered * centered, seg, preferred_element_type=jnp.float32) * inv_l
    o_ref[...] = (centered * jax.lax.rsqrt(var + EPS)).astype(o_ref.dtype)


def instance_norm1d_pallas(x):
    """InstanceNorm1d forward for x:(N, C, L) with L dividing 128 (lane-segment path)."""
    n, c, l = x.shape
    if _LANE % l != 0:
        raise ValueError(f"segment path requires L | 128, got L={l}")
    r = n * c
    itemsize_eff = max(jnp.dtype(x.dtype).itemsize, 4)     # kernel upcasts to f32

    vmem_limit = _vmem_limit_bytes()

    # Lane-dense slab (rows, 128) via a free contiguous reshape — no HBM transpose.
    rows = pl.cdiv(r * l, _LANE)

    # Row-tile: ~vmem_limit/16 bytes of f32 per block (double-buffered in+out plus
    # f32 temporaries stay well inside vmem_limit), capped at _MAX_ROW_TILE.
    tr_fit = max(_SUBLANE, (vmem_limit // 16) // (_LANE * itemsize_eff))
    tr_cap = max(_SUBLANE, (min(_MAX_ROW_TILE, tr_fit) // _SUBLANE) * _SUBLANE)
    if rows <= tr_cap:
        tr = _round_up(rows, _SUBLANE)
    else:
        num_tiles = pl.cdiv(rows, tr_cap)
        num_tiles += num_tiles % 2          # even tile count: balanced across 2 TCs (v7x)
        tr = _round_up(pl.cdiv(rows, num_tiles), _SUBLANE)
    num_tiles = pl.cdiv(rows, tr)
    rows_pad = num_tiles * tr

    flat = x.reshape(r * l)
    total = rows_pad * _LANE
    if total != r * l:                      # zero-pad only when shapes require it
        flat = jnp.pad(flat, (0, total - r * l))
    x2d = flat.reshape(rows_pad, _LANE)

    # Constant 128x128 block-diagonal "segment sum + broadcast" matrix.
    li = jax.lax.broadcasted_iota(jnp.int32, (_LANE, _LANE), 0)
    lj = jax.lax.broadcasted_iota(jnp.int32, (_LANE, _LANE), 1)
    seg = (li // l == lj // l).astype(jnp.float32)

    kernel = functools.partial(_segment_norm_kernel, inv_l=1.0 / l)
    out2d = pl.pallas_call(
        kernel,
        out_shape=jax.ShapeDtypeStruct((rows_pad, _LANE), x.dtype),
        grid_spec=pltpu.PrefetchScalarGridSpec(
            num_scalar_prefetch=0,
            grid=(num_tiles,),
            in_specs=[
                pl.BlockSpec((tr, _LANE), lambda i: (i, 0)),
                pl.BlockSpec((_LANE, _LANE), lambda i: (0, 0)),   # resident constant
            ],
            out_specs=pl.BlockSpec((tr, _LANE), lambda i: (i, 0)),
        ),
        compiler_params=pltpu.CompilerParams(
            dimension_semantics=("parallel",),   # shard row-tiles across TCs on v7x
            vmem_limit_bytes=vmem_limit,
        ),
    )(x2d, seg)

    out = out2d.reshape(total)
    if total != r * l:
        out = out[: r * l]
    return out.reshape(n, c, l)


def instance_norm1d(x):
    """Dispatcher matching nn.InstanceNorm1d forward semantics for (N, C, L)."""
    _, _, l = x.shape
    if _LANE % l == 0:
        return instance_norm1d_pallas(x)
    # TODO(synk): generic L (not dividing 128) falls back to plain XLA instead of a
    # transposed-slab Pallas path.
    mean = jnp.mean(x, axis=-1, keepdims=True)
    var = jnp.mean(jnp.square(x - mean), axis=-1, keepdims=True)
    return (x - mean) * jax.lax.rsqrt(var + EPS)


if __name__ == "__main__":
    key = jax.random.PRNGKey(0)
    # Shapes consistent with nn.InstanceNorm1d(3): (batch=2, channels=3, length=16).
    # Nonzero mean / scale to exercise the two-pass variance numerics.
    x = jax.random.normal(key, (2, 3, 16), dtype=jnp.float32) * 3.0 + 5.0

    y = jax.block_until_ready(jax.jit(instance_norm1d_pallas)(x))

    mean = jnp.mean(x, axis=-1, keepdims=True)
    var = jnp.mean((x - mean) ** 2, axis=-1, keepdims=True)
    ref = (x - mean) / jnp.sqrt(var + EPS)
    assert jnp.allclose(y, ref, atol=1e-5, rtol=1e-5), "mismatch vs reference"

    print("KERNEL_OK")
</pallas_src>

<mosaic_0001>
module attributes {stable_mosaic.version = 11 : i64} {
  func.func @_segment_norm_kernel(%arg0: i32, %arg1: memref<8x128xf32, #tpu.memory_space<vmem>>, %arg2: memref<128x128xf32, #tpu.memory_space<vmem>>, %arg3: memref<8x128xf32, #tpu.memory_space<vmem>>) attributes {dimension_semantics = [#tpu.dimension_semantics<parallel>], iteration_bounds = array<i64: 1>, scalar_prefetch = 0 : i64, scratch_operands = 0 : i64, tpu.core_type = #tpu.core_type<tc>, window_params = [{transform_indices = @transform_0, window_bounds = array<i64: 8, 128>}, {pipeline_mode = #tpu.pipeline_mode<synchronous>, transform_indices = @transform_1, window_bounds = array<i64: 128, 128>}, {transform_indices = @transform_2, window_bounds = array<i64: 8, 128>}]} {
    %c0 = arith.constant 0 : index
    %c0_0 = arith.constant 0 : index
    %0 = vector.load %arg1[%c0, %c0_0] : memref<8x128xf32, #tpu.memory_space<vmem>>, vector<8x128xf32>
    %c0_1 = arith.constant 0 : index
    %c0_2 = arith.constant 0 : index
    %1 = vector.load %arg2[%c0_1, %c0_2] : memref<128x128xf32, #tpu.memory_space<vmem>>, vector<128x128xf32>
    %cst = arith.constant dense<0.000000e+00> : vector<8x128xf32>
    %2 = tpu.matmul %0, %1, %cst {dimension_numbers = #tpu.dot_dimension_numbers<[1], [0], [0], [1], [0, 0, 1, 1], [], []>} : vector<8x128xf32>, vector<128x128xf32>, vector<8x128xf32> -> vector<8x128xf32>
    %cst_3 = arith.constant 6.250000e-02 : f32
    %3 = vector.broadcast %cst_3 : f32 to vector<8x128xf32>
    %4 = arith.mulf %2, %3 : vector<8x128xf32>
    %5 = arith.subf %0, %4 : vector<8x128xf32>
    %6 = arith.mulf %5, %5 : vector<8x128xf32>
    %cst_4 = arith.constant dense<0.000000e+00> : vector<8x128xf32>
    %7 = tpu.matmul %6, %1, %cst_4 {dimension_numbers = #tpu.dot_dimension_numbers<[1], [0], [0], [1], [0, 0, 1, 1], [], []>} : vector<8x128xf32>, vector<128x128xf32>, vector<8x128xf32> -> vector<8x128xf32>
    %cst_5 = arith.constant 6.250000e-02 : f32
    %8 = vector.broadcast %cst_5 : f32 to vector<8x128xf32>
    %9 = arith.mulf %7, %8 : vector<8x128xf32>
    %cst_6 = arith.constant 9.99999974E-6 : f32
    %10 = vector.broadcast %cst_6 : f32 to vector<8x128xf32>
    %11 = arith.addf %9, %10 : vector<8x128xf32>
    %12 = math.rsqrt %11 : vector<8x128xf32>
    %13 = arith.mulf %5, %12 : vector<8x128xf32>
    %c0_7 = arith.constant 0 : index
    %c0_8 = arith.constant 0 : index
    %14 = vector.load %arg3[%c0_7, %c0_8] : memref<8x128xf32, #tpu.memory_space<vmem>>, vector<8x128xf32>
    tpu.vector_store %arg3[%c0_7, %c0_8], %13 {strides = array<i32>} : memref<8x128xf32, #tpu.memory_space<vmem>>, vector<8x128xf32>,
    return
  }
  func.func @transform_0(%arg0: i32) -> (i32, i32) {
    %c0_i32 = arith.constant 0 : i32
    %c0_i32_0 = arith.constant 0 : i32
    return %arg0, %c0_i32 : i32, i32
  }
  func.func @transform_1(%arg0: i32) -> (i32, i32) {
    %c0_i32 = arith.constant 0 : i32
    %c0_i32_0 = arith.constant 0 : i32
    %c0_i32_1 = arith.constant 0 : i32
    return %c0_i32, %c0_i32_0 : i32, i32
  }
  func.func @transform_2(%arg0: i32) -> (i32, i32) {
    %c0_i32 = arith.constant 0 : i32
    %c0_i32_0 = arith.constant 0 : i32
    return %arg0, %c0_i32 : i32, i32
  }
}

</mosaic_0001>

<llo_original>
// kernel: instance_norm1d_pallas.1
$region0: #{instance_norm1d_pallas.1}
  #allocation0 [shape = 'u32[]', space=smem, size = 0x4, offset = 0x4, fixed_abs, tag = 'smem constant byte address 0x4 - core index']
  #allocation1 [shape = 'u32[72,128]{1,0:T(1,128)}', space=vmem, size = 0x9000, scoped, tag = 'internal scratch']
  %s0 = inlined_call_operand.vmem [shape: f32[8,128], index: 0, kind: input, shape index: {}]
  %s1 = inlined_call_operand.vmem [shape: f32[128,128], index: 1, kind: input, shape index: {}]
  %s2 = inlined_call_operand.vmem [shape: f32[8,128], index: 2, kind: output, shape index: {}]
  %s3 = sld [smem:[#allocation0]]
  $region18: #{instance_norm1d_pallas.1} parent=0
    _
  %s5 = ssub.s32 1, %s3
  %s6 = scalar_select 0, %s5, %s3
  // Predicated region
  $region2: #{instance_norm1d_pallas.1} parent=0 // pred_check
    _
  $region3: #{instance_norm1d_pallas.1} parent=0 // pred_check_branch
    %8 = sbr.rel (0) target = $region5
  $region4: #{instance_norm1d_pallas.1} parent=0 // pred_region
    _
  $region5: #{instance_norm1d_pallas.1} parent=0 // pred_fallthru
    _
  // Predicated region
  $region6: #{instance_norm1d_pallas.1} parent=0 // pred_check
    _
  $region7: #{instance_norm1d_pallas.1} parent=0 // pred_check_branch
    %10 = sbr.rel (0) target = $region9
  $region8: #{instance_norm1d_pallas.1} parent=0 // pred_region
    _
  $region9: #{instance_norm1d_pallas.1} parent=0 // pred_fallthru
    _
  %v11 = vld [vmem:[%s0] sm:$0xff]
  %v12 = vld [vmem:[%s1] sm:$0xff]
  %v13 = vld [vmem:[%s1 + $0x8] sm:$0xff]
  %v14 = vld [vmem:[%s1 + $0x10] sm:$0xff]
  %v15 = vld [vmem:[%s1 + $0x18] sm:$0xff]
  %v16 = vld [vmem:[%s1 + $0x20] sm:$0xff]
  %v17 = vld [vmem:[%s1 + $0x28] sm:$0xff]
  %v18 = vld [vmem:[%s1 + $0x30] sm:$0xff]
  %v19 = vld [vmem:[%s1 + $0x38] sm:$0xff]
  %v20 = vld [vmem:[%s1 + $0x40] sm:$0xff]
  %v21 = vld [vmem:[%s1 + $0x48] sm:$0xff]
  %v22 = vld [vmem:[%s1 + $0x50] sm:$0xff]
  %v23 = vld [vmem:[%s1 + $0x58] sm:$0xff]
  %v24 = vld [vmem:[%s1 + $0x60] sm:$0xff]
  %v25 = vld [vmem:[%s1 + $0x68] sm:$0xff]
  %v26 = vld [vmem:[%s1 + $0x70] sm:$0xff]
  %v27 = vld [vmem:[%s1 + $0x78] sm:$0xff]
  %28 = vmatpush.msra.mxu0 %v27
  %29 = vmatpush.msra.mxu0 %v26
  %30 = vmatpush.msra.mxu0 %v25
  %31 = vmatpush.msra.mxu0 %v24
  %32 = vmatpush.msra.mxu0 %v23
  %33 = vmatpush.msra.mxu0 %v22
  %34 = vmatpush.msra.mxu0 %v21
  %35 = vmatpush.msra.mxu0 %v20
  %36 = vmatpush.msra.mxu0 %v19
  %37 = vmatpush.msra.mxu0 %v18
  %38 = vmatpush.msra.mxu0 %v17
  %39 = vmatpush.msra.mxu0 %v16
  %40 = vmatpush.msra.mxu0 %v15
  %41 = vmatpush.msra.mxu0 %v14
  %42 = vmatpush.msra.mxu0 %v13
  %43 = vmatpush.msra.mxu0 %v12
  %44 = vmatmul.f32.gmra.mxu0 %v11
  %v45 = vpop.f32.mrf.mxu0
  %v46 = vadd.f32 0.0, %v45
  %47 = vdwg.mxu0
  %v48 = vmul.f32 %v46, 0.0625
  %v49 = vsub.f32 %v11, %v48
  %v50 = vmul.f32 %v49, %v49
  %51 = vmatpush.msra.mxu0 %v27
  %52 = vmatpush.msra.mxu0 %v26
  %53 = vmatpush.msra.mxu0 %v25
  %54 = vmatpush.msra.mxu0 %v24
  %55 = vmatpush.msra.mxu0 %v23
  %56 = vmatpush.msra.mxu0 %v22
  %57 = vmatpush.msra.mxu0 %v21
  %58 = vmatpush.msra.mxu0 %v20
  %59 = vmatpush.msra.mxu0 %v19
  %60 = vmatpush.msra.mxu0 %v18
  %61 = vmatpush.msra.mxu0 %v17
  %62 = vmatpush.msra.mxu0 %v16
  %63 = vmatpush.msra.mxu0 %v15
  %64 = vmatpush.msra.mxu0 %v14
  %65 = vmatpush.msra.mxu0 %v13
  %66 = vmatpush.msra.mxu0 %v12
  %67 = vmatmul.f32.gmra.mxu0 %v50
  %v68 = vpop.f32.mrf.mxu0
  %v69 = vadd.f32 0.0, %v68
  %70 = vdwg.mxu0
  %v71 = vmul.f32 %v69, 0.0625
  %v72 = vadd.f32 %v71, 1e-05
  %v73 = vrsqrt.pop %v72
  %v74 = vmul.f32 %v73, %v72
  %v75 = vmul.f32 %v74, %v73
  %v76 = vmul.f32 0.5, %v75
  %v77 = vsub.f32 1.5, %v76
  %v78 = vmul.f32 %v73, %v77
  %vm79 = vweird.f32 %v72
  %vm80 = vweird.f32 %v73
  %vm81 = vmor %vm79, %vm80
  %v82 = vsel %vm81, %v73, %v78
  %v83 = vmul.f32 %v49, %v82
  %84 = vst [vmem:[%s2] sm:$0xff] %v83
  // Predicated region
  $region10: #{instance_norm1d_pallas.1} parent=0 // pred_check
    _
  $region11: #{instance_norm1d_pallas.1} parent=0 // pred_check_branch
    %86 = sbr.rel (0) target = $region13
  $region12: #{instance_norm1d_pallas.1} parent=0 // pred_region
    _
  $region13: #{instance_norm1d_pallas.1} parent=0 // pred_fallthru
    _
  // Predicated region
  $region14: #{instance_norm1d_pallas.1} parent=0 // pred_check
    _
  $region15: #{instance_norm1d_pallas.1} parent=0 // pred_check_branch
    %88 = sbr.rel (0) target = $region17
  $region16: #{instance_norm1d_pallas.1} parent=0 // pred_region
    _
  $region17: #{instance_norm1d_pallas.1} parent=0 // pred_fallthru
    _

</llo_original>
